<compile_context>
chip_gen: v7x
topology: tpu7x:2x2x1
jax: 0.10.0
libtpu: 0.0.40
codegen_flags: <defaults>
</compile_context>

<pallas_src>
import jax
import jax.numpy as jnp
from jax.experimental import pallas as pl
from jax.experimental.pallas import tpu as pltpu


def _round_up(x, m):
    return ((x + m - 1) // m) * m


def gated_fusion_kernel(f1_ref, f2_ref, w1a_ref, w1b_ref, b1_ref,
                        w2_ref, b2_ref, o_ref):
    # First linear on the MXU: cat([f1, f2]) @ W1 == f1 @ W1a + f2 @ W1b.
    h = (jnp.dot(f1_ref[...], w1a_ref[...], preferred_element_type=jnp.float32)
         + jnp.dot(f2_ref[...], w1b_ref[...], preferred_element_type=jnp.float32)
         + b1_ref[...])                         # (TB, Dp) f32
    h = jnp.tanh(h)                             # EUP

    # Second linear has output width 1 -> keep it off the MXU:
    # VPU multiply against w2 stored as a (1, Dp) row + lane reduction (XLU).
    logit = jnp.sum(h * w2_ref[...], axis=-1, keepdims=True) + b2_ref[...]
    alpha = jax.nn.sigmoid(logit)               # (TB, 1) f32

    # Gated blend in f32, rewritten to save one multiply:
    #   alpha*f1 + (1-alpha)*f2 == f2 + alpha*(f1 - f2)
    f1 = f1_ref[...].astype(jnp.float32)
    f2 = f2_ref[...].astype(jnp.float32)
    o_ref[...] = (f2 + alpha * (f1 - f2)).astype(o_ref.dtype)


def gated_fusion(f1, f2, w1, b1, w2, b2, *, block_rows=512):
    """f1, f2: (B, D). w1: (2D, D), b1: (D,), w2: (D, 1), b2: (1,)."""
    B, D = f1.shape
    dtype = f1.dtype
    itemsize = jnp.dtype(dtype).itemsize

    # Pad lane axis to a multiple of 128 and rows to a multiple of 8 so every
    # block satisfies the TPU (8, 128) tiling constraint.  Zero padding is
    # exact here: padded h columns are tanh(0 + 0) = 0 and multiply zero w2
    # entries, and padded out columns/rows are sliced off below.
    Dp = max(_round_up(D, 128), 128)
    Bp = _round_up(B, 8)
    TB = min(block_rows, Bp)          # row-tile size (multiple of 8)
    Bp = _round_up(Bp, TB)
    grid = (Bp // TB,)

    pad2 = lambda a, r, c: jnp.pad(a, ((0, r - a.shape[0]), (0, c - a.shape[1])))

    f1p = pad2(f1, Bp, Dp)
    f2p = pad2(f2, Bp, Dp)
    w1a = pad2(w1[:D, :], Dp, Dp)                 # rows multiplying f1
    w1b = pad2(w1[D:, :], Dp, Dp)                 # rows multiplying f2
    b1p = pad2(b1.reshape(1, D), 1, Dp)
    w2p = pad2(w2.reshape(1, D), 1, Dp)           # gate weights as a (1, Dp) row
    b2p = b2.reshape(1, 1)

    # Pipelined row tiles for the big data movers; constant index_map keeps
    # weights/biases VMEM-resident across all grid steps.
    row_spec = pl.BlockSpec((TB, Dp), lambda i: (i, 0))
    res_spec = lambda shape: pl.BlockSpec(shape, lambda i: (0, 0))

    # VMEM budget: double-buffered (f1, f2, out) tiles + resident weights +
    # headroom for f32 intermediates (h, blend temporaries).
    tile_bytes = TB * Dp * max(itemsize, 4)
    weight_bytes = 2 * Dp * Dp * itemsize + 3 * Dp * 4
    vmem_limit = 2 * 3 * tile_bytes + 2 * weight_bytes + 4 * tile_bytes + (4 << 20)
    vmem_limit = int(min(max(vmem_limit, 16 << 20), 100 << 20))

    cost = pl.CostEstimate(
        flops=4 * Bp * Dp * Dp + 6 * Bp * Dp,
        transcendentals=Bp * Dp + Bp,
        bytes_accessed=3 * Bp * Dp * itemsize + (2 * Dp * Dp) * itemsize + 3 * Dp * 4,
    )

    out = pl.pallas_call(
        gated_fusion_kernel,
        out_shape=jax.ShapeDtypeStruct((Bp, Dp), dtype),
        grid=grid,
        in_specs=[
            row_spec,                 # f1  (row-tiled, double-buffered)
            row_spec,                 # f2
            res_spec((Dp, Dp)),       # w1a (resident)
            res_spec((Dp, Dp)),       # w1b (resident)
            res_spec((1, Dp)),        # b1
            res_spec((1, Dp)),        # w2 as a row (gate logit off the MXU)
            res_spec((1, 1)),         # b2
        ],
        out_specs=pl.BlockSpec((TB, Dp), lambda i: (i, 0)),
        compiler_params=pltpu.CompilerParams(
            dimension_semantics=("parallel",),   # megacore sharding on v7x
            vmem_limit_bytes=vmem_limit,
        ),
        cost_estimate=cost,
    )(f1p, f2p, w1a, w1b, b1p, w2p, b2p)

    return out[:B, :D]


def gated_fusion_ref(f1, f2, w1, b1, w2, b2):
    z = jnp.concatenate([f1, f2], axis=1)
    h = jnp.tanh(z @ w1 + b1)
    alpha = jax.nn.sigmoid(h @ w2 + b2)
    return alpha * f1 + (1.0 - alpha) * f2


if __name__ == "__main__":
    B, D = 2, 32
    key = jax.random.PRNGKey(0)
    k1, k2, k3, k4, k5, k6 = jax.random.split(key, 6)

    f1 = jax.random.normal(k1, (B, D), dtype=jnp.float32)
    f2 = jax.random.normal(k2, (B, D), dtype=jnp.float32)

    # Deterministic parameter init (PyTorch nn.Linear-style uniform bounds).
    bound1 = 1.0 / jnp.sqrt(2.0 * D)
    w1 = jax.random.uniform(k3, (2 * D, D), minval=-bound1, maxval=bound1,
                            dtype=jnp.float32)
    b1 = jax.random.uniform(k4, (D,), minval=-bound1, maxval=bound1,
                            dtype=jnp.float32)
    bound2 = 1.0 / jnp.sqrt(float(D))
    w2 = jax.random.uniform(k5, (D, 1), minval=-bound2, maxval=bound2,
                            dtype=jnp.float32)
    b2 = jax.random.uniform(k6, (1,), minval=-bound2, maxval=bound2,
                            dtype=jnp.float32)

    out = gated_fusion(f1, f2, w1, b1, w2, b2)
    jax.block_until_ready(out)

    ref = gated_fusion_ref(f1, f2, w1, b1, w2, b2)
    assert out.shape == (B, D)
    assert jnp.allclose(out, ref, atol=1e-5, rtol=1e-5), "mismatch vs reference"

    print("KERNEL_OK")
</pallas_src>

<mosaic_0001>
module attributes {stable_mosaic.version = 11 : i64} {
  func.func @gated_fusion_kernel(%arg0: i32, %arg1: memref<8x128xf32, #tpu.memory_space<vmem>>, %arg2: memref<8x128xf32, #tpu.memory_space<vmem>>, %arg3: memref<128x128xf32, #tpu.memory_space<vmem>>, %arg4: memref<128x128xf32, #tpu.memory_space<vmem>>, %arg5: memref<1x128xf32, #tpu.memory_space<vmem>>, %arg6: memref<1x128xf32, #tpu.memory_space<vmem>>, %arg7: memref<1x1xf32, #tpu.memory_space<vmem>>, %arg8: memref<8x128xf32, #tpu.memory_space<vmem>>) attributes {dimension_semantics = [#tpu.dimension_semantics<parallel>], iteration_bounds = array<i64: 1>, scalar_prefetch = 0 : i64, scratch_operands = 0 : i64, tpu.core_type = #tpu.core_type<tc>, window_params = [{transform_indices = @transform_0, window_bounds = array<i64: 8, 128>}, {transform_indices = @transform_1, window_bounds = array<i64: 8, 128>}, {pipeline_mode = #tpu.pipeline_mode<synchronous>, transform_indices = @transform_2, window_bounds = array<i64: 128, 128>}, {pipeline_mode = #tpu.pipeline_mode<synchronous>, transform_indices = @transform_3, window_bounds = array<i64: 128, 128>}, {pipeline_mode = #tpu.pipeline_mode<synchronous>, transform_indices = @transform_4, window_bounds = array<i64: 1, 128>}, {pipeline_mode = #tpu.pipeline_mode<synchronous>, transform_indices = @transform_5, window_bounds = array<i64: 1, 128>}, {pipeline_mode = #tpu.pipeline_mode<synchronous>, transform_indices = @transform_6, window_bounds = array<i64: 1, 1>}, {transform_indices = @transform_7, window_bounds = array<i64: 8, 128>}]} {
    %c0 = arith.constant 0 : index
    %c0_0 = arith.constant 0 : index
    %0 = vector.load %arg1[%c0, %c0_0] : memref<8x128xf32, #tpu.memory_space<vmem>>, vector<8x128xf32>
    %c0_1 = arith.constant 0 : index
    %c0_2 = arith.constant 0 : index
    %1 = vector.load %arg3[%c0_1, %c0_2] : memref<128x128xf32, #tpu.memory_space<vmem>>, vector<128x128xf32>
    %cst = arith.constant dense<0.000000e+00> : vector<8x128xf32>
    %2 = tpu.matmul %0, %1, %cst {dimension_numbers = #tpu.dot_dimension_numbers<[1], [0], [0], [1], [0, 0, 1, 1], [], []>} : vector<8x128xf32>, vector<128x128xf32>, vector<8x128xf32> -> vector<8x128xf32>
    %c0_3 = arith.constant 0 : index
    %c0_4 = arith.constant 0 : index
    %3 = vector.load %arg2[%c0_3, %c0_4] : memref<8x128xf32, #tpu.memory_space<vmem>>, vector<8x128xf32>
    %c0_5 = arith.constant 0 : index
    %c0_6 = arith.constant 0 : index
    %4 = vector.load %arg4[%c0_5, %c0_6] : memref<128x128xf32, #tpu.memory_space<vmem>>, vector<128x128xf32>
    %cst_7 = arith.constant dense<0.000000e+00> : vector<8x128xf32>
    %5 = tpu.matmul %3, %4, %cst_7 {dimension_numbers = #tpu.dot_dimension_numbers<[1], [0], [0], [1], [0, 0, 1, 1], [], []>} : vector<8x128xf32>, vector<128x128xf32>, vector<8x128xf32> -> vector<8x128xf32>
    %6 = arith.addf %2, %5 : vector<8x128xf32>
    %c0_8 = arith.constant 0 : index
    %c0_9 = arith.constant 0 : index
    %7 = vector.load %arg5[%c0_8, %c0_9] : memref<1x128xf32, #tpu.memory_space<vmem>>, vector<1x128xf32>
    %8 = vector.broadcast %7 : vector<1x128xf32> to vector<8x128xf32>
    %9 = arith.addf %6, %8 : vector<8x128xf32>
    %10 = math.tanh %9 : vector<8x128xf32>
    %c0_10 = arith.constant 0 : index
    %c0_11 = arith.constant 0 : index
    %11 = vector.load %arg6[%c0_10, %c0_11] : memref<1x128xf32, #tpu.memory_space<vmem>>, vector<1x128xf32>
    %12 = vector.broadcast %11 : vector<1x128xf32> to vector<8x128xf32>
    %13 = arith.mulf %10, %12 : vector<8x128xf32>
    %cst_12 = arith.constant dense<0.000000e+00> : vector<8xf32>
    %14 = vector.multi_reduction <add>, %13, %cst_12 [1] : vector<8x128xf32> to vector<8xf32>
    %15 = vector.shape_cast %14 : vector<8xf32> to vector<8x1xf32>
    %c0_13 = arith.constant 0 : index
    %c0_14 = arith.constant 0 : index
    %16 = vector.load %arg7[%c0_13, %c0_14] : memref<1x1xf32, #tpu.memory_space<vmem>>, vector<1x1xf32>
    %17 = vector.broadcast %16 : vector<1x1xf32> to vector<8x1xf32>
    %18 = arith.addf %15, %17 : vector<8x1xf32>
    %19 = arith.negf %18 : vector<8x1xf32>
    %20 = math.exp %19 : vector<8x1xf32>
    %cst_15 = arith.constant 1.000000e+00 : f32
    %21 = vector.broadcast %cst_15 : f32 to vector<8x1xf32>
    %22 = arith.addf %21, %20 : vector<8x1xf32>
    %23 = arith.divf %21, %22 : vector<8x1xf32>
    %c0_16 = arith.constant 0 : index
    %c0_17 = arith.constant 0 : index
    %24 = vector.load %arg1[%c0_16, %c0_17] : memref<8x128xf32, #tpu.memory_space<vmem>>, vector<8x128xf32>
    %c0_18 = arith.constant 0 : index
    %c0_19 = arith.constant 0 : index
    %25 = vector.load %arg2[%c0_18, %c0_19] : memref<8x128xf32, #tpu.memory_space<vmem>>, vector<8x128xf32>
    %26 = arith.subf %24, %25 : vector<8x128xf32>
    %27 = vector.broadcast %23 : vector<8x1xf32> to vector<8x128xf32>
    %28 = arith.mulf %27, %26 : vector<8x128xf32>
    %29 = arith.addf %25, %28 : vector<8x128xf32>
    %c0_20 = arith.constant 0 : index
    %c0_21 = arith.constant 0 : index
    %30 = vector.load %arg8[%c0_20, %c0_21] : memref<8x128xf32, #tpu.memory_space<vmem>>, vector<8x128xf32>
    tpu.vector_store %arg8[%c0_20, %c0_21], %29 {strides = array<i32>} : memref<8x128xf32, #tpu.memory_space<vmem>>, vector<8x128xf32>,
    return
  }
  func.func @transform_0(%arg0: i32) -> (i32, i32) {
    %c0_i32 = arith.constant 0 : i32
    %c0_i32_0 = arith.constant 0 : i32
    return %arg0, %c0_i32 : i32, i32
  }
  func.func @transform_1(%arg0: i32) -> (i32, i32) {
    %c0_i32 = arith.constant 0 : i32
    %c0_i32_0 = arith.constant 0 : i32
    return %arg0, %c0_i32 : i32, i32
  }
  func.func @transform_2(%arg0: i32) -> (i32, i32) {
    %c0_i32 = arith.constant 0 : i32
    %c0_i32_0 = arith.constant 0 : i32
    %c0_i32_1 = arith.constant 0 : i32
    return %c0_i32, %c0_i32_0 : i32, i32
  }
  func.func @transform_3(%arg0: i32) -> (i32, i32) {
    %c0_i32 = arith.constant 0 : i32
    %c0_i32_0 = arith.constant 0 : i32
    %c0_i32_1 = arith.constant 0 : i32
    return %c0_i32, %c0_i32_0 : i32, i32
  }
  func.func @transform_4(%arg0: i32) -> (i32, i32) {
    %c0_i32 = arith.constant 0 : i32
    %c0_i32_0 = arith.constant 0 : i32
    %c0_i32_1 = arith.constant 0 : i32
    return %c0_i32, %c0_i32_0 : i32, i32
  }
  func.func @transform_5(%arg0: i32) -> (i32, i32) {
    %c0_i32 = arith.constant 0 : i32
    %c0_i32_0 = arith.constant 0 : i32
    %c0_i32_1 = arith.constant 0 : i32
    return %c0_i32, %c0_i32_0 : i32, i32
  }
  func.func @transform_6(%arg0: i32) -> (i32, i32) {
    %c0_i32 = arith.constant 0 : i32
    %c0_i32_0 = arith.constant 0 : i32
    %c0_i32_1 = arith.constant 0 : i32
    return %c0_i32, %c0_i32_0 : i32, i32
  }
  func.func @transform_7(%arg0: i32) -> (i32, i32) {
    %c0_i32 = arith.constant 0 : i32
    %c0_i32_0 = arith.constant 0 : i32
    return %arg0, %c0_i32 : i32, i32
  }
}

</mosaic_0001>

<llo_original>
// kernel: tpu_custom_call.1
$region0: #{tpu_custom_call.1}
  #allocation0 [shape = 'u32[]', space=smem, size = 0x4, offset = 0x4, fixed_abs, tag = 'smem constant byte address 0x4 - core index']
  #allocation1 [shape = 'u32[144,128]{1,0:T(1,128)}', space=vmem, size = 0x12000, scoped, tag = 'internal scratch']
  #allocation2 [shape = 'f32[1,1]{1,0:T(1,128)S(1)}', space=vmem, size = 0x200, scoped, tag = 'scoped memory for tpu_custom_call.1']
  %s0 = inlined_call_operand.hbm [shape: f32[8,128], index: 0, kind: input, shape index: {}]
  %s1 = inlined_call_operand.hbm [shape: f32[8,128], index: 1, kind: input, shape index: {}]
  %s2 = inlined_call_operand.hbm [shape: f32[128,128], index: 2, kind: input, shape index: {}]
  %s3 = inlined_call_operand.hbm [shape: f32[128,128], index: 3, kind: input, shape index: {}]
  %s4 = inlined_call_operand.vmem [shape: f32[1,128], index: 4, kind: input, shape index: {}]
  %s5 = inlined_call_operand.vmem [shape: f32[1,128], index: 5, kind: input, shape index: {}]
  %s6 = inlined_call_operand.<no memory space> [shape: f32[1,1], index: 6, kind: input, shape index: {}]
  %s7 = inlined_call_operand.hbm [shape: f32[8,128], index: 7, kind: output, shape index: {}]
  %s8 = sld [smem:[#allocation0]]
  $region54: #{tpu_custom_call.1} parent=0
    _
  %s10 = ssub.s32 1, %s8
  %s11 = scalar_select 0, %s10, %s8
  %v12 = vstv %s6
  %13 = vst [vmem:[#allocation2] sm:$0x1] %v12
  $region1: #{tpu_custom_call.1} parent=0
    #allocation3 [shape = 'u8[4096]{0}', space=vmem, size = 0x1000, scoped, tag = 'input window, operand 0, single buffered']
    #allocation4 [shape = 's32[1]{0}', space=sflag, size = 0x4, scoped, tag = 'scoped memory for tpu_custom_call.1']
    #allocation5 [shape = 's32[1]{0}', space=sflag, size = 0x4, scoped, tag = 'scoped memory for tpu_custom_call.1']
    #allocation6 [shape = 'u8[4096]{0}', space=vmem, size = 0x1000, scoped, tag = 'input window, operand 1, single buffered']
    #allocation7 [shape = 's32[1]{0}', space=sflag, size = 0x4, scoped, tag = 'scoped memory for tpu_custom_call.1']
    #allocation8 [shape = 'u8[65536]{0}', space=vmem, size = 0x10000, scoped, tag = 'input window, operand 2, single buffered']
    #allocation9 [shape = 'u8[65536]{0}', space=vmem, size = 0x10000, scoped, tag = 'input window, operand 3, single buffered']
    #allocation10 [shape = 's32[1]{0}', space=sflag, size = 0x4, scoped, tag = 'scoped memory for tpu_custom_call.1']
    #allocation11 [shape = 'u8[4096]{0}', space=vmem, size = 0x1000, scoped, tag = 'output window, operand 0, single buffered']
    %14 = vsyncpa [#allocation4], 0
    %15 = vsyncpa [#allocation7], 0
    %16 = vsyncpa [#allocation10], 0
    %17 = vsyncpa [#allocation5], 0
    // Predicated region
    $region2: #{tpu_custom_call.1} parent=1 // pred_check
      _
    $region3: #{tpu_custom_call.1} parent=1 // pred_check_branch
      %19 = sbr.rel (0) target = $region5
    $region4: #{tpu_custom_call.1} parent=1 // pred_region
      %s21 = ssub.s32 128, 128
      %22 = vsyncadd [#allocation4], %s21
      %s24 = sshll.u32 [#allocation3], 4
      %s25 = int_to_ptr.vmem [resolvable:$true] %s24
      %27 = dma.hbm_to_vmem [thread:$0]  %s0, 128, %s25, [#allocation4]
    $region5: #{tpu_custom_call.1} parent=1 // pred_fallthru
      _
    // Predicated region
    $region6: #{tpu_custom_call.1} parent=1 // pred_check
      _
    $region7: #{tpu_custom_call.1} parent=1 // pred_check_branch
      %29 = sbr.rel (0) target = $region9
    $region8: #{tpu_custom_call.1} parent=1 // pred_region
      %s31 = ssub.s32 128, 128
      %32 = vsyncadd [#allocation7], %s31
      %s34 = sshll.u32 [#allocation6], 4
      %s35 = int_to_ptr.vmem [resolvable:$true] %s34
      %37 = dma.hbm_to_vmem [thread:$0]  %s1, 128, %s35, [#allocation7]
    $region9: #{tpu_custom_call.1} parent=1 // pred_fallthru
      _
    // Predicated region
    $region10: #{tpu_custom_call.1} parent=1 // pred_check
      _
    $region11: #{tpu_custom_call.1} parent=1 // pred_check_branch
      %39 = sbr.rel (0) target = $region13
    $region12: #{tpu_custom_call.1} parent=1 // pred_region
      %s41 = ssub.s32 2048, 2048
      %42 = vsyncadd [#allocation7], %s41
      %s43 = sshll.u32 [#allocation8], 4
      %s44 = int_to_ptr.vmem [resolvable:$true] %s43
      %49 = dma.hbm_to_vmem [thread:$0]  %s2, 2048, %s44, [#allocation7], 128, 128, 8
    $region13: #{tpu_custom_call.1} parent=1 // pred_fallthru
      _
    // Predicated region
    $region14: #{tpu_custom_call.1} parent=1 // pred_check
      _
    $region15: #{tpu_custom_call.1} parent=1 // pred_check_branch
      %51 = sbr.rel (0) target = $region17
    $region16: #{tpu_custom_call.1} parent=1 // pred_region
      %s53 = ssub.s32 2048, 2048
      %54 = vsyncadd [#allocation10], %s53
      %s55 = sshll.u32 [#allocation9], 4
      %s56 = int_to_ptr.vmem [resolvable:$true] %s55
      %61 = dma.hbm_to_vmem [thread:$0]  %s3, 2048, %s56, [#allocation10], 128, 128, 8
    $region17: #{tpu_custom_call.1} parent=1 // pred_fallthru
      _
    // Predicated region
    $region18: #{tpu_custom_call.1} parent=1 // pred_check
      _
    $region19: #{tpu_custom_call.1} parent=1 // pred_check_branch
      %63 = sbr.rel (0) target = $region21
    $region20: #{tpu_custom_call.1} parent=1 // pred_region
      _
    $region21: #{tpu_custom_call.1} parent=1 // pred_fallthru
      _
    // Predicated region
    $region22: #{tpu_custom_call.1} parent=1 // pred_check
      _
    $region23: #{tpu_custom_call.1} parent=1 // pred_check_branch
      %65 = sbr.rel (0) target = $region25
    $region24: #{tpu_custom_call.1} parent=1 // pred_region
      _
    $region25: #{tpu_custom_call.1} parent=1 // pred_fallthru
      _
    // Predicated region
    $region26: #{tpu_custom_call.1} parent=1 // pred_check
      _
    $region27: #{tpu_custom_call.1} parent=1 // pred_check_branch
      %67 = sbr.rel (0) target = $region29
    $region28: #{tpu_custom_call.1} parent=1 // pred_region
      _
    $region29: #{tpu_custom_call.1} parent=1 // pred_fallthru
      _
    // Predicated region
    $region30: #{tpu_custom_call.1} parent=1 // pred_check
      _
    $region31: #{tpu_custom_call.1} parent=1 // pred_check_branch
      %69 = sbr.rel (0) target = $region33
    $region32: #{tpu_custom_call.1} parent=1 // pred_region
      %70 = dma.done [#allocation4], 128
    $region33: #{tpu_custom_call.1} parent=1 // pred_fallthru
      _
    // Predicated region
    $region34: #{tpu_custom_call.1} parent=1 // pred_check
      _
    $region35: #{tpu_custom_call.1} parent=1 // pred_check_branch
      %72 = sbr.rel (0) target = $region37
    $region36: #{tpu_custom_call.1} parent=1 // pred_region
      %73 = dma.done [#allocation7], 128
    $region37: #{tpu_custom_call.1} parent=1 // pred_fallthru
      _
    // Predicated region
    $region38: #{tpu_custom_call.1} parent=1 // pred_check
      _
    $region39: #{tpu_custom_call.1} parent=1 // pred_check_branch
      %75 = sbr.rel (0) target = $region41
    $region40: #{tpu_custom_call.1} parent=1 // pred_region
      %76 = dma.done [#allocation7], 2048
    $region41: #{tpu_custom_call.1} parent=1 // pred_fallthru
      _
    // Predicated region
    $region42: #{tpu_custom_call.1} parent=1 // pred_check
      _
    $region43: #{tpu_custom_call.1} parent=1 // pred_check_branch
      %78 = sbr.rel (0) target = $region45
    $region44: #{tpu_custom_call.1} parent=1 // pred_region
      %79 = dma.done [#allocation10], 2048
    $region45: #{tpu_custom_call.1} parent=1 // pred_fallthru
      _
    %v80 = vld [vmem:[#allocation3] sm:$0xff]
    %v81 = vld [vmem:[#allocation8] sm:$0xff]
    %v82 = vld [vmem:[#allocation8 + $0x8] sm:$0xff]
    %v83 = vld [vmem:[#allocation8 + $0x10] sm:$0xff]
    %v84 = vld [vmem:[#allocation8 + $0x18] sm:$0xff]
    %v85 = vld [vmem:[#allocation8 + $0x20] sm:$0xff]
    %v86 = vld [vmem:[#allocation8 + $0x28] sm:$0xff]
    %v87 = vld [vmem:[#allocation8 + $0x30] sm:$0xff]
    %v88 = vld [vmem:[#allocation8 + $0x38] sm:$0xff]
    %v89 = vld [vmem:[#allocation8 + $0x40] sm:$0xff]
    %v90 = vld [vmem:[#allocation8 + $0x48] sm:$0xff]
    %v91 = vld [vmem:[#allocation8 + $0x50] sm:$0xff]
    %v92 = vld [vmem:[#allocation8 + $0x58] sm:$0xff]
    %v93 = vld [vmem:[#allocation8 + $0x60] sm:$0xff]
    %v94 = vld [vmem:[#allocation8 + $0x68] sm:$0xff]
    %v95 = vld [vmem:[#allocation8 + $0x70] sm:$0xff]
    %v96 = vld [vmem:[#allocation8 + $0x78] sm:$0xff]
    %v97 = vld [vmem:[#allocation6] sm:$0xff]
    %v98 = vld [vmem:[#allocation9] sm:$0xff]
    %v99 = vld [vmem:[#allocation9 + $0x8] sm:$0xff]
    %v100 = vld [vmem:[#allocation9 + $0x10] sm:$0xff]
    %v101 = vld [vmem:[#allocation9 + $0x18] sm:$0xff]
    %v102 = vld [vmem:[#allocation9 + $0x20] sm:$0xff]
    %v103 = vld [vmem:[#allocation9 + $0x28] sm:$0xff]
    %v104 = vld [vmem:[#allocation9 + $0x30] sm:$0xff]
    %v105 = vld [vmem:[#allocation9 + $0x38] sm:$0xff]
    %v106 = vld [vmem:[#allocation9 + $0x40] sm:$0xff]
    %v107 = vld [vmem:[#allocation9 + $0x48] sm:$0xff]
    %v108 = vld [vmem:[#allocation9 + $0x50] sm:$0xff]
    %v109 = vld [vmem:[#allocation9 + $0x58] sm:$0xff]
    %v110 = vld [vmem:[#allocation9 + $0x60] sm:$0xff]
    %v111 = vld [vmem:[#allocation9 + $0x68] sm:$0xff]
    %v112 = vld [vmem:[#allocation9 + $0x70] sm:$0xff]
    %v113 = vld [vmem:[#allocation9 + $0x78] sm:$0xff]
    %114 = vmatprep.subr.mxu0 0.0
    %115 = vmatpush1.msra.mxu0 %v98
    %116 = vmatprep.subr.mxu0 0.0
    %117 = vmatpush1.msra.mxu0 %v99
    %118 = vmatprep.subr.mxu0 0.0
    %119 = vmatpush1.msra.mxu0 %v100
    %120 = vmatprep.subr.mxu0 0.0
    %121 = vmatpush1.msra.mxu0 %v101
    %122 = vmatprep.subr.mxu0 0.0
    %123 = vmatpush1.msra.mxu0 %v102
    %124 = vmatprep.subr.mxu0 0.0
    %125 = vmatpush1.msra.mxu0 %v103
    %126 = vmatprep.subr.mxu0 0.0
    %127 = vmatpush1.msra.mxu0 %v104
    %128 = vmatprep.subr.mxu0 0.0
    %129 = vmatpush1.msra.mxu0 %v105
    %130 = vmatprep.subr.mxu0 0.0
    %131 = vmatpush1.msra.mxu0 %v106
    %132 = vmatprep.subr.mxu0 0.0
    %133 = vmatpush1.msra.mxu0 %v107
    %134 = vmatprep.subr.mxu0 0.0
    %135 = vmatpush1.msra.mxu0 %v108
    %136 = vmatprep.subr.mxu0 0.0
    %137 = vmatpush1.msra.mxu0 %v109
    %138 = vmatprep.subr.mxu0 0.0
    %139 = vmatpush1.msra.mxu0 %v110
    %140 = vmatprep.subr.mxu0 0.0
    %141 = vmatpush1.msra.mxu0 %v111
    %142 = vmatprep.subr.mxu0 0.0
    %143 = vmatpush1.msra.mxu0 %v112
    %144 = vmatprep.subr.mxu0 0.0
    %145 = vmatpush1.msra.mxu0 %v113
    %146 = vmatprep.subr.mxu0 0.0
    %147 = vmatpush1.msra.mxu0 0.0
    %148 = vmatprep.subr.mxu0 0.0
    %149 = vmatpush1.msra.mxu0 0.0
    %150 = vmatprep.subr.mxu0 0.0
    %151 = vmatpush1.msra.mxu0 0.0
    %152 = vmatprep.subr.mxu0 0.0
    %153 = vmatpush1.msra.mxu0 0.0
    %154 = vmatprep.subr.mxu0 0.0
    %155 = vmatpush1.msra.mxu0 0.0
    %156 = vmatprep.subr.mxu0 0.0
    %157 = vmatpush1.msra.mxu0 0.0
    %158 = vmatprep.subr.mxu0 0.0
    %159 = vmatpush1.msra.mxu0 0.0
    %160 = vmatprep.subr.mxu0 0.0
    %161 = vmatpush1.msra.mxu0 0.0
    %162 = vmatprep.subr.mxu0 0.0
    %163 = vmatpush1.msra.mxu0 0.0
    %164 = vmatprep.subr.mxu0 0.0
    %165 = vmatpush1.msra.mxu0 0.0
    %166 = vmatprep.subr.mxu0 0.0
    %167 = vmatpush1.msra.mxu0 0.0
    %168 = vmatprep.subr.mxu0 0.0
    %169 = vmatpush1.msra.mxu0 0.0
    %170 = vmatprep.subr.mxu0 0.0
    %171 = vmatpush1.msra.mxu0 0.0
    %172 = vmatprep.subr.mxu0 0.0
    %173 = vmatpush1.msra.mxu0 0.0
    %174 = vmatprep.subr.mxu0 0.0
    %175 = vmatpush1.msra.mxu0 0.0
    %176 = vmatprep.subr.mxu0 0.0
    %177 = vmatpush1.msra.mxu0 0.0
    %178 = vmatprep.mubr.f32.mxu0 0.0
    %179 = vmatmul.mubr.f32.gmra.mrb[0].mxu0 %v97
    %v180 = vpop.f32.mrb[0].mxu0
    %v181 = vadd.f32 0.0, %v180
    %v182 = vpop.f32.mrb[0].mxu0
    %183 = vdwg.mxu0
    %184 = vmatprep.subr.mxu0 0.0
    %185 = vmatpush1.msra.mxu0 %v81
    %186 = vmatprep.subr.mxu0 0.0
    %187 = vmatpush1.msra.mxu0 %v82
    %188 = vmatprep.subr.mxu0 0.0
    %189 = vmatpush1.msra.mxu0 %v83
    %190 = vmatprep.subr.mxu0 0.0
    %191 = vmatpush1.msra.mxu0 %v84
    %192 = vmatprep.subr.mxu0 0.0
    %193 = vmatpush1.msra.mxu0 %v85
    %194 = vmatprep.subr.mxu0 0.0
    %195 = vmatpush1.msra.mxu0 %v86
    %196 = vmatprep.subr.mxu0 0.0
    %197 = vmatpush1.msra.mxu0 %v87
    %198 = vmatprep.subr.mxu0 0.0
    %199 = vmatpush1.msra.mxu0 %v88
    %200 = vmatprep.subr.mxu0 0.0
    %201 = vmatpush1.msra.mxu0 %v89
    %202 = vmatprep.subr.mxu0 0.0
    %203 = vmatpush1.msra.mxu0 %v90
    %204 = vmatprep.subr.mxu0 0.0
    %205 = vmatpush1.msra.mxu0 %v91
    %206 = vmatprep.subr.mxu0 0.0
    %207 = vmatpush1.msra.mxu0 %v92
    %208 = vmatprep.subr.mxu0 0.0
    %209 = vmatpush1.msra.mxu0 %v93
    %210 = vmatprep.subr.mxu0 0.0
    %211 = vmatpush1.msra.mxu0 %v94
    %212 = vmatprep.subr.mxu0 0.0
    %213 = vmatpush1.msra.mxu0 %v95
    %214 = vmatprep.subr.mxu0 0.0
    %215 = vmatpush1.msra.mxu0 %v96
    %216 = vmatprep.subr.mxu0 0.0
    %217 = vmatpush1.msra.mxu0 0.0
    %218 = vmatprep.subr.mxu0 0.0
    %219 = vmatpush1.msra.mxu0 0.0
    %220 = vmatprep.subr.mxu0 0.0
    %221 = vmatpush1.msra.mxu0 0.0
    %222 = vmatprep.subr.mxu0 0.0
    %223 = vmatpush1.msra.mxu0 0.0
    %224 = vmatprep.subr.mxu0 0.0
    %225 = vmatpush1.msra.mxu0 0.0
    %226 = vmatprep.subr.mxu0 0.0
    %227 = vmatpush1.msra.mxu0 0.0
    %228 = vmatprep.subr.mxu0 0.0
    %229 = vmatpush1.msra.mxu0 0.0
    %230 = vmatprep.subr.mxu0 0.0
    %231 = vmatpush1.msra.mxu0 0.0
    %232 = vmatprep.subr.mxu0 0.0
    %233 = vmatpush1.msra.mxu0 0.0
    %234 = vmatprep.subr.mxu0 0.0
    %235 = vmatpush1.msra.mxu0 0.0
    %236 = vmatprep.subr.mxu0 0.0
    %237 = vmatpush1.msra.mxu0 0.0
    %238 = vmatprep.subr.mxu0 0.0
    %239 = vmatpush1.msra.mxu0 0.0
    %240 = vmatprep.subr.mxu0 0.0
    %241 = vmatpush1.msra.mxu0 0.0
    %242 = vmatprep.subr.mxu0 0.0
    %243 = vmatpush1.msra.mxu0 0.0
    %244 = vmatprep.subr.mxu0 0.0
    %245 = vmatpush1.msra.mxu0 0.0
    %246 = vmatprep.subr.mxu0 0.0
    %247 = vmatpush1.msra.mxu0 0.0
    %248 = vmatprep.mubr.f32.mxu0 0.0
    %249 = vmatmul.mubr.f32.gmra.mrb[0].mxu0 %v80
    %v250 = vpop.f32.mrb[0].mxu0
    %v251 = vadd.f32 %v181, %v250
    %v252 = vpop.f32.mrb[0].mxu0
    %253 = vdwg.mxu0
    %v254 = vld [vmem:[%s4] sm:$0x1]
    %v256 = vlaneseq
    %v257 = vshrl.u32 %v256, 7
    %v258 = vsub.s32 0, %v257
    %v259 = vrot.slane %v254, %v258
    %v261 = vadd.f32 %v251, %v259
    %v262 = vtanh.pop %v261
    %v263 = vld [vmem:[%s5] sm:$0x1]
    %v265 = vlaneseq
    %v266 = vshrl.u32 %v265, 7
    %v267 = vsub.s32 0, %v266
    %v268 = vrot.slane %v263, %v267
    %v270 = vmul.f32 %v262, %v268
    %271 = vadd.xlane.f32.xlu0 %v270
    %v272 = vpop.xlane.xlu0 %271
    %v273 = vld [vmem:[#allocation2] sm:$0x1]
    %v275 = vlaneseq
    %v276 = vshrl.u32 %v275, 7
    %v277 = vsub.s32 0, %v276
    %v278 = vrot.slane %v273, %v277
    %v280 = vadd.f32 %v272, %v278
    %v281 = vxor.u32 %v280, 2147483648
    %v282 = vmul.f32 %v281, 1.442695
    %v283 = vpow.pop %v282
    %v284 = vadd.f32 %v283, 1.0
    %v285 = vrcp.pop %v284
    %v286 = vmul.f32 1.0, %v285
    %v287 = vsub.f32 %v80, %v97
    %289 = vset.pattern.permute.xlu0 0
    %290 = vperm.xlu0 %289, %v286
    %v291 = vpop.permute.xlu0 %290
    %v293 = vmul.f32 %v291, %v287
    %v294 = vadd.f32 %v97, %v293
    %295 = vst [vmem:[#allocation11] sm:$0xff] %v294
    // Predicated region
    $region46: #{tpu_custom_call.1} parent=1 // pred_check
      _
    $region47: #{tpu_custom_call.1} parent=1 // pred_check_branch
      %297 = sbr.rel (0) target = $region49
    $region48: #{tpu_custom_call.1} parent=1 // pred_region
      %s299 = ssub.s32 128, 128
      %300 = vsyncadd [#allocation5], %s299
      %s302 = sshll.u32 [#allocation11], 4
      %s303 = int_to_ptr.vmem [resolvable:$true] %s302
      %305 = dma.vmem_to_hbm [thread:$0]  %s303, 128, %s7, [#allocation5]
    $region49: #{tpu_custom_call.1} parent=1 // pred_fallthru
      _
    // Predicated region
    $region50: #{tpu_custom_call.1} parent=1 // pred_check
      _
    $region51: #{tpu_custom_call.1} parent=1 // pred_check_branch
      %307 = sbr.rel (0) target = $region53
    $region52: #{tpu_custom_call.1} parent=1 // pred_region
      %308 = dma.done [#allocation5], 128
    $region53: #{tpu_custom_call.1} parent=1 // pred_fallthru
      _
    %309 = vsyncpa [#allocation4], 1
    %310 = vsyncpa [#allocation7], 1
    %311 = vsyncpa [#allocation10], 1
    %312 = vsyncpa [#allocation5], 1

</llo_original>
